<compile_context>
chip_gen: v6e
topology: v6e:2x2x1
jax: 0.10.0
libtpu: 0.0.40
codegen_flags: <defaults>
</compile_context>

<pallas_src>
import jax
import jax.numpy as jnp
from jax.experimental import pallas as pl
from jax.experimental.pallas import tpu as pltpu

LANE = 128  # vreg lane width — pad all feature dims to a multiple of this


def _round_up(n, m):
    return ((n + m - 1) // m) * m


def _pad2(a, shape):
    return jnp.pad(a, [(0, t - s) for s, t in zip(a.shape, shape)])


def fcnet_kernel(x_ref, w1_ref, b1_ref, scale_ref, bias_ref,
                 wc_ref, bc_ref, w2_ref, b2_ref, o_ref):
    # ---- fc1 + ReLU -----------------------------------------------------
    h = jnp.dot(x_ref[...], w1_ref[...], preferred_element_type=jnp.float32)
    h = jnp.maximum(h + b1_ref[...], 0.0)                       # (TB, Hp) f32

    # ---- CustomizedLayer --------------------------------------------------
    # norm = sqrt(sum(x^2, dim=1, keepdim=True)); x = x / norm
    #   -> implemented as x * rsqrt(sumsq): rsqrt goes to the EUP slot,
    #      the divide becomes a VPU multiply.
    sumsq = jnp.sum(h * h, axis=1, keepdims=True)               # (TB, 1)
    hn = h * jax.lax.rsqrt(sumsq)                               # (TB, Hp)
    z = hn * scale_ref[...] + bias_ref[...]                     # (TB, Hp)
    c = jnp.dot(z.astype(wc_ref.dtype), wc_ref[...],
                preferred_element_type=jnp.float32) + bc_ref[...]

    # ---- fc2 --------------------------------------------------------------
    y = jnp.dot(c.astype(w2_ref.dtype), w2_ref[...],
                preferred_element_type=jnp.float32)
    o_ref[...] = (y + b2_ref[...]).astype(o_ref.dtype)          # (TB, Cp)


def fully_connected_net(x, params, *, batch_tile=128, use_bf16=False):
    """x: (B, input_size) f32.  params: (in,out) weights / (1,out) bias rows."""
    B, In = x.shape
    H = params["w1_t"].shape[1]
    C = params["w2_t"].shape[1]

    In_p = _round_up(In, LANE)
    H_p = _round_up(H, LANE)
    C_p = _round_up(C, LANE)
    TB = batch_tile                       # multiple of 8 (here 128)
    B_p = _round_up(B, TB)

    # bf16 matmul inputs ~2x MXU throughput on v6e/v7x (keeps f32 accumulate);
    # off by default so numerics match the f32 PyTorch module exactly.
    mat_dt = jnp.bfloat16 if use_bf16 else jnp.float32

    x_p = _pad2(x, (B_p, In_p)).astype(mat_dt)
    w1 = _pad2(params["w1_t"], (In_p, H_p)).astype(mat_dt)
    wc = _pad2(params["wc_t"], (H_p, H_p)).astype(mat_dt)
    w2 = _pad2(params["w2_t"], (H_p, C_p)).astype(mat_dt)
    b1 = _pad2(params["b1"], (1, H_p))
    scale = _pad2(params["scale"], (1, H_p))
    bias = _pad2(params["bias"], (1, H_p))
    bc = _pad2(params["bc"], (1, H_p))
    b2 = _pad2(params["b2"], (1, C_p))

    # --- Block specs: x/out tiled over batch, weights resident ------------
    x_spec = pl.BlockSpec((TB, In_p), lambda i: (i, 0))
    out_spec = pl.BlockSpec((TB, C_p), lambda i: (i, 0))

    def resident(shape):
        # Constant block index across all grid steps -> fetched once, stays
        # in VMEM for the whole kernel.
        return pl.BlockSpec(shape, lambda i: (0, 0))

    in_specs = [
        x_spec,
        resident((In_p, H_p)), resident((1, H_p)),       # w1, b1
        resident((1, H_p)), resident((1, H_p)),          # scale, bias
        resident((H_p, H_p)), resident((1, H_p)),        # wc, bc
        resident((H_p, C_p)), resident((1, C_p)),        # w2, b2
    ]

    # --- VMEM budget + cost estimate ---------------------------------------
    w_item = jnp.dtype(mat_dt).itemsize
    weight_bytes = (In_p * H_p + H_p * H_p + H_p * C_p) * w_item \
        + (4 * H_p + C_p) * 4
    tile_bytes = 2 * TB * (In_p * w_item + C_p * 4)      # double-buffered x/out
    scratch_bytes = 6 * TB * H_p * 4                     # h/hn/z/c f32 temps
    vmem_limit = int(min(max(2 * (weight_bytes + tile_bytes + scratch_bytes),
                             16 * 1024 * 1024), 48 * 1024 * 1024))

    flops = 2 * B_p * (In_p * H_p + H_p * H_p + H_p * C_p)
    bytes_accessed = B_p * In_p * w_item + B_p * C_p * 4 + weight_bytes

    out_p = pl.pallas_call(
        fcnet_kernel,
        out_shape=jax.ShapeDtypeStruct((B_p, C_p), jnp.float32),
        grid=(B_p // TB,),
        in_specs=in_specs,
        out_specs=out_spec,
        compiler_params=pltpu.CompilerParams(
            dimension_semantics=("parallel",),
            vmem_limit_bytes=vmem_limit),
        cost_estimate=pl.CostEstimate(
            flops=int(flops),
            transcendentals=int(B_p),
            bytes_accessed=int(bytes_accessed)),
    )(x_p, w1, b1, scale, bias, wc, bc, w2, b2)

    return out_p[:B, :C]


def reference_forward(x, params):
    """Pure-JAX reference mirroring the PyTorch forward (sqrt + divide)."""
    h = jnp.maximum(x @ params["w1_t"] + params["b1"], 0.0)
    norm = jnp.sqrt(jnp.sum(h * h, axis=1, keepdims=True))
    hn = h / norm
    z = hn * params["scale"] + params["bias"]
    c = z @ params["wc_t"] + params["bc"]
    return c @ params["w2_t"] + params["b2"]


def init_params(key, input_size, hidden, num_classes):
    ks = jax.random.split(key, 8)
    return {
        # fc1: Linear(input_size, hidden) -> stored transposed (in, out)
        "w1_t": jax.random.normal(ks[0], (input_size, hidden), jnp.float32) * 0.1,
        "b1":   jax.random.normal(ks[1], (1, hidden), jnp.float32) * 0.1,
        # CustomizedLayer: scale, bias (hidden,), fc: Linear(hidden, hidden)
        "scale": jax.random.normal(ks[2], (1, hidden), jnp.float32) * 0.5 + 1.0,
        "bias":  jax.random.normal(ks[3], (1, hidden), jnp.float32) * 0.1,
        "wc_t":  jax.random.normal(ks[4], (hidden, hidden), jnp.float32) * 0.1,
        "bc":    jax.random.normal(ks[5], (1, hidden), jnp.float32) * 0.1,
        # fc2: Linear(hidden, num_classes) -> stored transposed (in, out)
        "w2_t": jax.random.normal(ks[6], (hidden, num_classes), jnp.float32) * 0.1,
        "b2":   jax.random.normal(ks[7], (1, num_classes), jnp.float32) * 0.1,
    }


if __name__ == "__main__":
    key = jax.random.PRNGKey(0)
    k_x, k_p = jax.random.split(key)

    batch, input_size, hidden, num_classes = 8, 16, 32, 10
    x = jax.random.normal(k_x, (batch, input_size), jnp.float32)
    params = init_params(k_p, input_size, hidden, num_classes)

    out = jax.block_until_ready(fully_connected_net(x, params))
    ref = jax.block_until_ready(reference_forward(x, params))

    assert out.shape == (batch, num_classes), out.shape
    # rsqrt-vs-(sqrt+div) and padded-MXU accumulation order give tiny f32
    # differences; 1e-4 comfortably covers them.
    assert jnp.allclose(out, ref, atol=1e-4, rtol=1e-4), "mismatch vs reference"
    print("KERNEL_OK")
</pallas_src>

<mosaic_0001>
module attributes {stable_mosaic.version = 11 : i64} {
  func.func @fcnet_kernel(%arg0: i32, %arg1: memref<128x128xf32, #tpu.memory_space<vmem>>, %arg2: memref<128x128xf32, #tpu.memory_space<vmem>>, %arg3: memref<1x128xf32, #tpu.memory_space<vmem>>, %arg4: memref<1x128xf32, #tpu.memory_space<vmem>>, %arg5: memref<1x128xf32, #tpu.memory_space<vmem>>, %arg6: memref<128x128xf32, #tpu.memory_space<vmem>>, %arg7: memref<1x128xf32, #tpu.memory_space<vmem>>, %arg8: memref<128x128xf32, #tpu.memory_space<vmem>>, %arg9: memref<1x128xf32, #tpu.memory_space<vmem>>, %arg10: memref<128x128xf32, #tpu.memory_space<vmem>>) attributes {dimension_semantics = [#tpu.dimension_semantics<parallel>], iteration_bounds = array<i64: 1>, scalar_prefetch = 0 : i64, scratch_operands = 0 : i64, tpu.core_type = #tpu.core_type<tc>, window_params = [{transform_indices = @transform_0, window_bounds = array<i64: 128, 128>}, {pipeline_mode = #tpu.pipeline_mode<synchronous>, transform_indices = @transform_1, window_bounds = array<i64: 128, 128>}, {pipeline_mode = #tpu.pipeline_mode<synchronous>, transform_indices = @transform_2, window_bounds = array<i64: 1, 128>}, {pipeline_mode = #tpu.pipeline_mode<synchronous>, transform_indices = @transform_3, window_bounds = array<i64: 1, 128>}, {pipeline_mode = #tpu.pipeline_mode<synchronous>, transform_indices = @transform_4, window_bounds = array<i64: 1, 128>}, {pipeline_mode = #tpu.pipeline_mode<synchronous>, transform_indices = @transform_5, window_bounds = array<i64: 128, 128>}, {pipeline_mode = #tpu.pipeline_mode<synchronous>, transform_indices = @transform_6, window_bounds = array<i64: 1, 128>}, {pipeline_mode = #tpu.pipeline_mode<synchronous>, transform_indices = @transform_7, window_bounds = array<i64: 128, 128>}, {pipeline_mode = #tpu.pipeline_mode<synchronous>, transform_indices = @transform_8, window_bounds = array<i64: 1, 128>}, {transform_indices = @transform_9, window_bounds = array<i64: 128, 128>}]} {
    %c0 = arith.constant 0 : index
    %c0_0 = arith.constant 0 : index
    %0 = vector.load %arg1[%c0, %c0_0] : memref<128x128xf32, #tpu.memory_space<vmem>>, vector<128x128xf32>
    %c0_1 = arith.constant 0 : index
    %c0_2 = arith.constant 0 : index
    %1 = vector.load %arg2[%c0_1, %c0_2] : memref<128x128xf32, #tpu.memory_space<vmem>>, vector<128x128xf32>
    %cst = arith.constant dense<0.000000e+00> : vector<128x128xf32>
    %2 = tpu.matmul %0, %1, %cst {dimension_numbers = #tpu.dot_dimension_numbers<[1], [0], [0], [1], [0, 0, 1, 1], [], []>} : vector<128x128xf32>, vector<128x128xf32>, vector<128x128xf32> -> vector<128x128xf32>
    %c0_3 = arith.constant 0 : index
    %c0_4 = arith.constant 0 : index
    %3 = vector.load %arg3[%c0_3, %c0_4] : memref<1x128xf32, #tpu.memory_space<vmem>>, vector<1x128xf32>
    %4 = vector.broadcast %3 : vector<1x128xf32> to vector<128x128xf32>
    %5 = arith.addf %2, %4 : vector<128x128xf32>
    %cst_5 = arith.constant 0.000000e+00 : f32
    %6 = vector.broadcast %cst_5 : f32 to vector<128x128xf32>
    %7 = arith.maximumf %5, %6 : vector<128x128xf32>
    %8 = arith.mulf %7, %7 : vector<128x128xf32>
    %cst_6 = arith.constant dense<0.000000e+00> : vector<128xf32>
    %9 = vector.multi_reduction <add>, %8, %cst_6 [1] : vector<128x128xf32> to vector<128xf32>
    %10 = vector.shape_cast %9 : vector<128xf32> to vector<128x1xf32>
    %11 = math.rsqrt %10 : vector<128x1xf32>
    %12 = vector.broadcast %11 : vector<128x1xf32> to vector<128x128xf32>
    %13 = arith.mulf %7, %12 : vector<128x128xf32>
    %c0_7 = arith.constant 0 : index
    %c0_8 = arith.constant 0 : index
    %14 = vector.load %arg4[%c0_7, %c0_8] : memref<1x128xf32, #tpu.memory_space<vmem>>, vector<1x128xf32>
    %15 = vector.broadcast %14 : vector<1x128xf32> to vector<128x128xf32>
    %16 = arith.mulf %13, %15 : vector<128x128xf32>
    %c0_9 = arith.constant 0 : index
    %c0_10 = arith.constant 0 : index
    %17 = vector.load %arg5[%c0_9, %c0_10] : memref<1x128xf32, #tpu.memory_space<vmem>>, vector<1x128xf32>
    %18 = vector.broadcast %17 : vector<1x128xf32> to vector<128x128xf32>
    %19 = arith.addf %16, %18 : vector<128x128xf32>
    %c0_11 = arith.constant 0 : index
    %c0_12 = arith.constant 0 : index
    %20 = vector.load %arg6[%c0_11, %c0_12] : memref<128x128xf32, #tpu.memory_space<vmem>>, vector<128x128xf32>
    %cst_13 = arith.constant dense<0.000000e+00> : vector<128x128xf32>
    %21 = tpu.matmul %19, %20, %cst_13 {dimension_numbers = #tpu.dot_dimension_numbers<[1], [0], [0], [1], [0, 0, 1, 1], [], []>} : vector<128x128xf32>, vector<128x128xf32>, vector<128x128xf32> -> vector<128x128xf32>
    %c0_14 = arith.constant 0 : index
    %c0_15 = arith.constant 0 : index
    %22 = vector.load %arg7[%c0_14, %c0_15] : memref<1x128xf32, #tpu.memory_space<vmem>>, vector<1x128xf32>
    %23 = vector.broadcast %22 : vector<1x128xf32> to vector<128x128xf32>
    %24 = arith.addf %21, %23 : vector<128x128xf32>
    %c0_16 = arith.constant 0 : index
    %c0_17 = arith.constant 0 : index
    %25 = vector.load %arg8[%c0_16, %c0_17] : memref<128x128xf32, #tpu.memory_space<vmem>>, vector<128x128xf32>
    %cst_18 = arith.constant dense<0.000000e+00> : vector<128x128xf32>
    %26 = tpu.matmul %24, %25, %cst_18 {dimension_numbers = #tpu.dot_dimension_numbers<[1], [0], [0], [1], [0, 0, 1, 1], [], []>} : vector<128x128xf32>, vector<128x128xf32>, vector<128x128xf32> -> vector<128x128xf32>
    %c0_19 = arith.constant 0 : index
    %c0_20 = arith.constant 0 : index
    %27 = vector.load %arg9[%c0_19, %c0_20] : memref<1x128xf32, #tpu.memory_space<vmem>>, vector<1x128xf32>
    %28 = vector.broadcast %27 : vector<1x128xf32> to vector<128x128xf32>
    %29 = arith.addf %26, %28 : vector<128x128xf32>
    %c0_21 = arith.constant 0 : index
    %c0_22 = arith.constant 0 : index
    %30 = vector.load %arg10[%c0_21, %c0_22] : memref<128x128xf32, #tpu.memory_space<vmem>>, vector<128x128xf32>
    tpu.vector_store %arg10[%c0_21, %c0_22], %29 {strides = array<i32>} : memref<128x128xf32, #tpu.memory_space<vmem>>, vector<128x128xf32>,
    return
  }
  func.func @transform_0(%arg0: i32) -> (i32, i32) {
    %c0_i32 = arith.constant 0 : i32
    %c0_i32_0 = arith.constant 0 : i32
    return %arg0, %c0_i32 : i32, i32
  }
  func.func @transform_1(%arg0: i32) -> (i32, i32) {
    %c0_i32 = arith.constant 0 : i32
    %c0_i32_0 = arith.constant 0 : i32
    %c0_i32_1 = arith.constant 0 : i32
    return %c0_i32, %c0_i32_0 : i32, i32
  }
  func.func @transform_2(%arg0: i32) -> (i32, i32) {
    %c0_i32 = arith.constant 0 : i32
    %c0_i32_0 = arith.constant 0 : i32
    %c0_i32_1 = arith.constant 0 : i32
    return %c0_i32, %c0_i32_0 : i32, i32
  }
  func.func @transform_3(%arg0: i32) -> (i32, i32) {
    %c0_i32 = arith.constant 0 : i32
    %c0_i32_0 = arith.constant 0 : i32
    %c0_i32_1 = arith.constant 0 : i32
    return %c0_i32, %c0_i32_0 : i32, i32
  }
  func.func @transform_4(%arg0: i32) -> (i32, i32) {
    %c0_i32 = arith.constant 0 : i32
    %c0_i32_0 = arith.constant 0 : i32
    %c0_i32_1 = arith.constant 0 : i32
    return %c0_i32, %c0_i32_0 : i32, i32
  }
  func.func @transform_5(%arg0: i32) -> (i32, i32) {
    %c0_i32 = arith.constant 0 : i32
    %c0_i32_0 = arith.constant 0 : i32
    %c0_i32_1 = arith.constant 0 : i32
    return %c0_i32, %c0_i32_0 : i32, i32
  }
  func.func @transform_6(%arg0: i32) -> (i32, i32) {
    %c0_i32 = arith.constant 0 : i32
    %c0_i32_0 = arith.constant 0 : i32
    %c0_i32_1 = arith.constant 0 : i32
    return %c0_i32, %c0_i32_0 : i32, i32
  }
  func.func @transform_7(%arg0: i32) -> (i32, i32) {
    %c0_i32 = arith.constant 0 : i32
    %c0_i32_0 = arith.constant 0 : i32
    %c0_i32_1 = arith.constant 0 : i32
    return %c0_i32, %c0_i32_0 : i32, i32
  }
  func.func @transform_8(%arg0: i32) -> (i32, i32) {
    %c0_i32 = arith.constant 0 : i32
    %c0_i32_0 = arith.constant 0 : i32
    %c0_i32_1 = arith.constant 0 : i32
    return %c0_i32, %c0_i32_0 : i32, i32
  }
  func.func @transform_9(%arg0: i32) -> (i32, i32) {
    %c0_i32 = arith.constant 0 : i32
    %c0_i32_0 = arith.constant 0 : i32
    return %arg0, %c0_i32 : i32, i32
  }
}

</mosaic_0001>

<llo_original>
// kernel: tpu_custom_call.1
$region0: #{tpu_custom_call.1}
  #allocation0 [shape = 'u32[]', space=smem, size = 0x4, offset = 0x4, fixed_abs, tag = 'smem constant byte address 0x4 - core index']
  #allocation1 [shape = 'u32[144,128]{1,0:T(1,128)}', space=vmem, size = 0x12000, scoped, tag = 'internal scratch']
  %s0 = inlined_call_operand.hbm [shape: f32[128,128], index: 0, kind: input, shape index: {}]
  %s1 = inlined_call_operand.hbm [shape: f32[128,128], index: 1, kind: input, shape index: {}]
  %s2 = inlined_call_operand.vmem [shape: f32[1,128], index: 2, kind: input, shape index: {}]
  %s3 = inlined_call_operand.vmem [shape: f32[1,128], index: 3, kind: input, shape index: {}]
  %s4 = inlined_call_operand.vmem [shape: f32[1,128], index: 4, kind: input, shape index: {}]
  %s5 = inlined_call_operand.hbm [shape: f32[128,128], index: 5, kind: input, shape index: {}]
  %s6 = inlined_call_operand.vmem [shape: f32[1,128], index: 6, kind: input, shape index: {}]
  %s7 = inlined_call_operand.hbm [shape: f32[128,128], index: 7, kind: input, shape index: {}]
  %s8 = inlined_call_operand.vmem [shape: f32[1,128], index: 8, kind: input, shape index: {}]
  %s9 = inlined_call_operand.hbm [shape: f32[128,128], index: 9, kind: output, shape index: {}]
  %s10 = sld [smem:[#allocation0]]
  $region62: #{tpu_custom_call.1} parent=0
    _
  %s12 = ssub.s32 1, %s10
  %s13 = scalar_select 0, %s12, %s10
  $region1: #{tpu_custom_call.1} parent=0
    #allocation2 [shape = 'u8[65536]{0}', space=vmem, size = 0x10000, scoped, tag = 'input window, operand 0, single buffered']
    #allocation3 [shape = 's32[1]{0}', space=sflag, size = 0x4, scoped, tag = 'scoped memory for tpu_custom_call.1']
    #allocation4 [shape = 's32[1]{0}', space=sflag, size = 0x4, scoped, tag = 'scoped memory for tpu_custom_call.1']
    #allocation5 [shape = 'u8[65536]{0}', space=vmem, size = 0x10000, scoped, tag = 'input window, operand 1, single buffered']
    #allocation6 [shape = 's32[1]{0}', space=sflag, size = 0x4, scoped, tag = 'scoped memory for tpu_custom_call.1']
    #allocation7 [shape = 'u8[65536]{0}', space=vmem, size = 0x10000, scoped, tag = 'input window, operand 5, single buffered']
    #allocation8 [shape = 'u8[65536]{0}', space=vmem, size = 0x10000, scoped, tag = 'input window, operand 7, single buffered']
    #allocation9 [shape = 's32[1]{0}', space=sflag, size = 0x4, scoped, tag = 'scoped memory for tpu_custom_call.1']
    #allocation10 [shape = 'u8[65536]{0}', space=vmem, size = 0x10000, scoped, tag = 'output window, operand 0, single buffered']
    %14 = vsyncpa [#allocation3], 0
    %15 = vsyncpa [#allocation6], 0
    %16 = vsyncpa [#allocation9], 0
    %17 = vsyncpa [#allocation4], 0
    // Predicated region
    $region2: #{tpu_custom_call.1} parent=1 // pred_check
      _
    $region3: #{tpu_custom_call.1} parent=1 // pred_check_branch
      %19 = sbr.rel (0) target = $region5
    $region4: #{tpu_custom_call.1} parent=1 // pred_region
      %s21 = ssub.s32 2048, 2048
      %22 = vsyncadd [#allocation3], %s21
      %s23 = sshll.u32 [#allocation2], 4
      %s24 = int_to_ptr.vmem [resolvable:$true] %s23
      %29 = dma.hbm_to_vmem [thread:$0]  %s0, 2048, %s24, [#allocation3], 128, 128, 8
    $region5: #{tpu_custom_call.1} parent=1 // pred_fallthru
      _
    // Predicated region
    $region6: #{tpu_custom_call.1} parent=1 // pred_check
      _
    $region7: #{tpu_custom_call.1} parent=1 // pred_check_branch
      %31 = sbr.rel (0) target = $region9
    $region8: #{tpu_custom_call.1} parent=1 // pred_region
      %s33 = ssub.s32 2048, 2048
      %34 = vsyncadd [#allocation6], %s33
      %s35 = sshll.u32 [#allocation5], 4
      %s36 = int_to_ptr.vmem [resolvable:$true] %s35
      %41 = dma.hbm_to_vmem [thread:$0]  %s1, 2048, %s36, [#allocation6], 128, 128, 8
    $region9: #{tpu_custom_call.1} parent=1 // pred_fallthru
      _
    // Predicated region
    $region10: #{tpu_custom_call.1} parent=1 // pred_check
      _
    $region11: #{tpu_custom_call.1} parent=1 // pred_check_branch
      %43 = sbr.rel (0) target = $region13
    $region12: #{tpu_custom_call.1} parent=1 // pred_region
      _
    $region13: #{tpu_custom_call.1} parent=1 // pred_fallthru
      _
    // Predicated region
    $region14: #{tpu_custom_call.1} parent=1 // pred_check
      _
    $region15: #{tpu_custom_call.1} parent=1 // pred_check_branch
      %45 = sbr.rel (0) target = $region17
    $region16: #{tpu_custom_call.1} parent=1 // pred_region
      _
    $region17: #{tpu_custom_call.1} parent=1 // pred_fallthru
      _
    // Predicated region
    $region18: #{tpu_custom_call.1} parent=1 // pred_check
      _
    $region19: #{tpu_custom_call.1} parent=1 // pred_check_branch
      %47 = sbr.rel (0) target = $region21
    $region20: #{tpu_custom_call.1} parent=1 // pred_region
      _
    $region21: #{tpu_custom_call.1} parent=1 // pred_fallthru
      _
    // Predicated region
    $region22: #{tpu_custom_call.1} parent=1 // pred_check
      _
    $region23: #{tpu_custom_call.1} parent=1 // pred_check_branch
      %49 = sbr.rel (0) target = $region25
    $region24: #{tpu_custom_call.1} parent=1 // pred_region
      %s51 = ssub.s32 2048, 2048
      %52 = vsyncadd [#allocation6], %s51
      %s53 = sshll.u32 [#allocation7], 4
      %s54 = int_to_ptr.vmem [resolvable:$true] %s53
      %59 = dma.hbm_to_vmem [thread:$0]  %s5, 2048, %s54, [#allocation6], 128, 128, 8
    $region25: #{tpu_custom_call.1} parent=1 // pred_fallthru
      _
    // Predicated region
    $region26: #{tpu_custom_call.1} parent=1 // pred_check
      _
    $region27: #{tpu_custom_call.1} parent=1 // pred_check_branch
      %61 = sbr.rel (0) target = $region29
    $region28: #{tpu_custom_call.1} parent=1 // pred_region
      _
    $region29: #{tpu_custom_call.1} parent=1 // pred_fallthru
      _
    // Predicated region
    $region30: #{tpu_custom_call.1} parent=1 // pred_check
      _
    $region31: #{tpu_custom_call.1} parent=1 // pred_check_branch
      %63 = sbr.rel (0) target = $region33
    $region32: #{tpu_custom_call.1} parent=1 // pred_region
      %s65 = ssub.s32 2048, 2048
      %66 = vsyncadd [#allocation9], %s65
      %s67 = sshll.u32 [#allocation8], 4
      %s68 = int_to_ptr.vmem [resolvable:$true] %s67
      %73 = dma.hbm_to_vmem [thread:$0]  %s7, 2048, %s68, [#allocation9], 128, 128, 8
    $region33: #{tpu_custom_call.1} parent=1 // pred_fallthru
      _
    // Predicated region
    $region34: #{tpu_custom_call.1} parent=1 // pred_check
      _
    $region35: #{tpu_custom_call.1} parent=1 // pred_check_branch
      %75 = sbr.rel (0) target = $region37
    $region36: #{tpu_custom_call.1} parent=1 // pred_region
      _
    $region37: #{tpu_custom_call.1} parent=1 // pred_fallthru
      _
    // Predicated region
    $region38: #{tpu_custom_call.1} parent=1 // pred_check
      _
    $region39: #{tpu_custom_call.1} parent=1 // pred_check_branch
      %77 = sbr.rel (0) target = $region41
    $region40: #{tpu_custom_call.1} parent=1 // pred_region
      %78 = dma.done [#allocation3], 2048
    $region41: #{tpu_custom_call.1} parent=1 // pred_fallthru
      _
    // Predicated region
    $region42: #{tpu_custom_call.1} parent=1 // pred_check
      _
    $region43: #{tpu_custom_call.1} parent=1 // pred_check_branch
      %80 = sbr.rel (0) target = $region45
    $region44: #{tpu_custom_call.1} parent=1 // pred_region
      %81 = dma.done [#allocation6], 2048
    $region45: #{tpu_custom_call.1} parent=1 // pred_fallthru
      _
    // Predicated region
    $region46: #{tpu_custom_call.1} parent=1 // pred_check
      _
    $region47: #{tpu_custom_call.1} parent=1 // pred_check_branch
      %83 = sbr.rel (0) target = $region49
    $region48: #{tpu_custom_call.1} parent=1 // pred_region
      %84 = dma.done [#allocation6], 2048
    $region49: #{tpu_custom_call.1} parent=1 // pred_fallthru
      _
    // Predicated region
    $region50: #{tpu_custom_call.1} parent=1 // pred_check
      _
    $region51: #{tpu_custom_call.1} parent=1 // pred_check_branch
      %86 = sbr.rel (0) target = $region53
    $region52: #{tpu_custom_call.1} parent=1 // pred_region
      %87 = dma.done [#allocation9], 2048
    $region53: #{tpu_custom_call.1} parent=1 // pred_fallthru
      _
    %v88 = vld [vmem:[#allocation2] sm:$0xff]
    %v89 = vld [vmem:[#allocation2 + $0x8] sm:$0xff]
    %v90 = vld [vmem:[#allocation2 + $0x10] sm:$0xff]
    %v91 = vld [vmem:[#allocation2 + $0x18] sm:$0xff]
    %v92 = vld [vmem:[#allocation2 + $0x20] sm:$0xff]
    %v93 = vld [vmem:[#allocation2 + $0x28] sm:$0xff]
    %v94 = vld [vmem:[#allocation2 + $0x30] sm:$0xff]
    %v95 = vld [vmem:[#allocation2 + $0x38] sm:$0xff]
    %v96 = vld [vmem:[#allocation2 + $0x40] sm:$0xff]
    %v97 = vld [vmem:[#allocation2 + $0x48] sm:$0xff]
    %v98 = vld [vmem:[#allocation2 + $0x50] sm:$0xff]
    %v99 = vld [vmem:[#allocation2 + $0x58] sm:$0xff]
    %v100 = vld [vmem:[#allocation2 + $0x60] sm:$0xff]
    %v101 = vld [vmem:[#allocation2 + $0x68] sm:$0xff]
    %v102 = vld [vmem:[#allocation2 + $0x70] sm:$0xff]
    %v103 = vld [vmem:[#allocation2 + $0x78] sm:$0xff]
    %v104 = vld [vmem:[#allocation5] sm:$0xff]
    %v105 = vld [vmem:[#allocation5 + $0x8] sm:$0xff]
    %v106 = vld [vmem:[#allocation5 + $0x10] sm:$0xff]
    %v107 = vld [vmem:[#allocation5 + $0x18] sm:$0xff]
    %v108 = vld [vmem:[#allocation5 + $0x20] sm:$0xff]
    %v109 = vld [vmem:[#allocation5 + $0x28] sm:$0xff]
    %v110 = vld [vmem:[#allocation5 + $0x30] sm:$0xff]
    %v111 = vld [vmem:[#allocation5 + $0x38] sm:$0xff]
    %v112 = vld [vmem:[#allocation5 + $0x40] sm:$0xff]
    %v113 = vld [vmem:[#allocation5 + $0x48] sm:$0xff]
    %v114 = vld [vmem:[#allocation5 + $0x50] sm:$0xff]
    %v115 = vld [vmem:[#allocation5 + $0x58] sm:$0xff]
    %v116 = vld [vmem:[#allocation5 + $0x60] sm:$0xff]
    %v117 = vld [vmem:[#allocation5 + $0x68] sm:$0xff]
    %v118 = vld [vmem:[#allocation5 + $0x70] sm:$0xff]
    %v119 = vld [vmem:[#allocation5 + $0x78] sm:$0xff]
    %v120 = vld [vmem:[%s2] sm:$0x1]
    %v122 = vlaneseq
    %v123 = vshrl.u32 %v122, 7
    %v124 = vsub.s32 0, %v123
    %v125 = vrot.slane %v120, %v124
    %127 = vmatprep.subr.mxu0 0.0
    %128 = vmatpush1.msra.mxu0 %v119
    %129 = vmatprep.subr.mxu0 0.0
    %130 = vmatpush1.msra.mxu0 %v118
    %131 = vmatprep.subr.mxu0 0.0
    %132 = vmatpush1.msra.mxu0 %v117
    %133 = vmatprep.subr.mxu0 0.0
    %134 = vmatpush1.msra.mxu0 %v116
    %135 = vmatprep.subr.mxu0 0.0
    %136 = vmatpush1.msra.mxu0 %v115
    %137 = vmatprep.subr.mxu0 0.0
    %138 = vmatpush1.msra.mxu0 %v114
    %139 = vmatprep.subr.mxu0 0.0
    %140 = vmatpush1.msra.mxu0 %v113
    %141 = vmatprep.subr.mxu0 0.0
    %142 = vmatpush1.msra.mxu0 %v112
    %143 = vmatprep.subr.mxu0 0.0
    %144 = vmatpush1.msra.mxu0 %v111
    %145 = vmatprep.subr.mxu0 0.0
    %146 = vmatpush1.msra.mxu0 %v110
    %147 = vmatprep.subr.mxu0 0.0
    %148 = vmatpush1.msra.mxu0 %v109
    %149 = vmatprep.subr.mxu0 0.0
    %150 = vmatpush1.msra.mxu0 %v108
    %151 = vmatprep.subr.mxu0 0.0
    %152 = vmatpush1.msra.mxu0 %v107
    %153 = vmatprep.subr.mxu0 0.0
    %154 = vmatpush1.msra.mxu0 %v106
    %155 = vmatprep.subr.mxu0 0.0
    %156 = vmatpush1.msra.mxu0 %v105
    %157 = vmatprep.subr.mxu0 0.0
    %158 = vmatpush1.msra.mxu0 %v104
    %159 = vmatprep.subr.mxu0 0.0
    %160 = vmatpush2.msra.mxu0 0.0
    %161 = vmatprep.subr.mxu0 0.0
    %162 = vmatpush2.msra.mxu0 0.0
    %163 = vmatprep.subr.mxu0 0.0
    %164 = vmatpush2.msra.mxu0 0.0
    %165 = vmatprep.subr.mxu0 0.0
    %166 = vmatpush2.msra.mxu0 0.0
    %167 = vmatprep.subr.mxu0 0.0
    %168 = vmatpush2.msra.mxu0 0.0
    %169 = vmatprep.subr.mxu0 0.0
    %170 = vmatpush2.msra.mxu0 0.0
    %171 = vmatprep.subr.mxu0 0.0
    %172 = vmatpush2.msra.mxu0 0.0
    %173 = vmatprep.subr.mxu0 0.0
    %174 = vmatpush2.msra.mxu0 0.0
    %175 = vmatprep.subr.mxu0 0.0
    %176 = vmatpush2.msra.mxu0 0.0
    %177 = vmatprep.subr.mxu0 0.0
    %178 = vmatpush2.msra.mxu0 0.0
    %179 = vmatprep.subr.mxu0 0.0
    %180 = vmatpush2.msra.mxu0 0.0
    %181 = vmatprep.subr.mxu0 0.0
    %182 = vmatpush2.msra.mxu0 0.0
    %183 = vmatprep.subr.mxu0 0.0
    %184 = vmatpush2.msra.mxu0 0.0
    %185 = vmatprep.subr.mxu0 0.0
    %186 = vmatpush2.msra.mxu0 0.0
    %187 = vmatprep.subr.mxu0 0.0
    %188 = vmatpush2.msra.mxu0 0.0
    %189 = vmatprep.subr.mxu0 0.0
    %190 = vmatpush2.msra.mxu0 0.0
    %191 = vmatprep.mubr.f32.mxu0 0.0
    %192 = vmatmul.mubr.f32.gmra.mxu0 %v88
    %v193 = vpop.f32.mrf.mxu0
    %v194 = vadd.f32 %v125, %v193
    %v195 = vpop.f32.mrf.mxu0
    %196 = vmatprep.mubr.f32.mxu0 0.0
    %197 = vmatmul.mubr.f32.gmra.mxu0 %v89
    %v198 = vpop.f32.mrf.mxu0
    %v199 = vadd.f32 %v125, %v198
    %v200 = vpop.f32.mrf.mxu0
    %201 = vmatprep.mubr.f32.mxu0 0.0
    %202 = vmatmul.mubr.f32.gmra.mxu0 %v90
    %v203 = vpop.f32.mrf.mxu0
    %v204 = vadd.f32 %v125, %v203
    %v205 = vpop.f32.mrf.mxu0
    %206 = vmatprep.mubr.f32.mxu0 0.0
    %207 = vmatmul.mubr.f32.gmra.mxu0 %v91
    %v208 = vpop.f32.mrf.mxu0
    %v209 = vadd.f32 %v125, %v208
    %v210 = vpop.f32.mrf.mxu0
    %211 = vmatprep.mubr.f32.mxu0 0.0
    %212 = vmatmul.mubr.f32.gmra.mxu0 %v92
    %v213 = vpop.f32.mrf.mxu0
    %v214 = vadd.f32 %v125, %v213
    %v215 = vpop.f32.mrf.mxu0
    %216 = vmatprep.mubr.f32.mxu0 0.0
    %217 = vmatmul.mubr.f32.gmra.mxu0 %v93
    %v218 = vpop.f32.mrf.mxu0
    %v219 = vadd.f32 %v125, %v218
    %v220 = vpop.f32.mrf.mxu0
    %221 = vmatprep.mubr.f32.mxu0 0.0
    %222 = vmatmul.mubr.f32.gmra.mxu0 %v94
    %v223 = vpop.f32.mrf.mxu0
    %v224 = vadd.f32 %v125, %v223
    %v225 = vpop.f32.mrf.mxu0
    %226 = vmatprep.mubr.f32.mxu0 0.0
    %227 = vmatmul.mubr.f32.gmra.mxu0 %v95
    %v228 = vpop.f32.mrf.mxu0
    %v229 = vadd.f32 %v125, %v228
    %v230 = vpop.f32.mrf.mxu0
    %231 = vmatprep.mubr.f32.mxu0 0.0
    %232 = vmatmul.mubr.f32.gmra.mxu0 %v96
    %v233 = vpop.f32.mrf.mxu0
    %v234 = vadd.f32 %v125, %v233
    %v235 = vpop.f32.mrf.mxu0
    %236 = vmatprep.mubr.f32.mxu0 0.0
    %237 = vmatmul.mubr.f32.gmra.mxu0 %v97
    %v238 = vpop.f32.mrf.mxu0
    %v239 = vadd.f32 %v125, %v238
    %v240 = vpop.f32.mrf.mxu0
    %241 = vmatprep.mubr.f32.mxu0 0.0
    %242 = vmatmul.mubr.f32.gmra.mxu0 %v98
    %v243 = vpop.f32.mrf.mxu0
    %v244 = vadd.f32 %v125, %v243
    %v245 = vpop.f32.mrf.mxu0
    %246 = vmatprep.mubr.f32.mxu0 0.0
    %247 = vmatmul.mubr.f32.gmra.mxu0 %v99
    %v248 = vpop.f32.mrf.mxu0
    %v249 = vadd.f32 %v125, %v248
    %v250 = vpop.f32.mrf.mxu0
    %251 = vmatprep.mubr.f32.mxu0 0.0
    %252 = vmatmul.mubr.f32.gmra.mxu0 %v100
    %v253 = vpop.f32.mrf.mxu0
    %v254 = vadd.f32 %v125, %v253
    %v255 = vpop.f32.mrf.mxu0
    %256 = vmatprep.mubr.f32.mxu0 0.0
    %257 = vmatmul.mubr.f32.gmra.mxu0 %v101
    %v258 = vpop.f32.mrf.mxu0
    %v259 = vadd.f32 %v125, %v258
    %v260 = vpop.f32.mrf.mxu0
    %261 = vmatprep.mubr.f32.mxu0 0.0
    %262 = vmatmul.mubr.f32.gmra.mxu0 %v102
    %v263 = vpop.f32.mrf.mxu0
    %v264 = vadd.f32 %v125, %v263
    %v265 = vpop.f32.mrf.mxu0
    %266 = vmatprep.mubr.f32.mxu0 0.0
    %267 = vmatmul.mubr.f32.gmra.mxu0 %v103
    %v268 = vpop.f32.mrf.mxu0
    %v269 = vadd.f32 %v125, %v268
    %v270 = vpop.f32.mrf.mxu0
    %271 = vdwg.mxu0
    %v272 = vmax.f32 %v194, 0.0
    %v273 = vmax.f32 %v199, 0.0
    %v274 = vmax.f32 %v204, 0.0
    %v275 = vmax.f32 %v209, 0.0
    %v276 = vmax.f32 %v214, 0.0
    %v277 = vmax.f32 %v219, 0.0
    %v278 = vmax.f32 %v224, 0.0
    %v279 = vmax.f32 %v229, 0.0
    %v280 = vmax.f32 %v234, 0.0
    %v281 = vmax.f32 %v239, 0.0
    %v282 = vmax.f32 %v244, 0.0
    %v283 = vmax.f32 %v249, 0.0
    %v284 = vmax.f32 %v254, 0.0
    %v285 = vmax.f32 %v259, 0.0
    %v286 = vmax.f32 %v264, 0.0
    %v287 = vmax.f32 %v269, 0.0
    %v288 = vmul.f32 %v272, %v272
    %v289 = vmul.f32 %v273, %v273
    %v290 = vmul.f32 %v274, %v274
    %v291 = vmul.f32 %v275, %v275
    %v292 = vmul.f32 %v276, %v276
    %v293 = vmul.f32 %v277, %v277
    %v294 = vmul.f32 %v278, %v278
    %v295 = vmul.f32 %v279, %v279
    %v296 = vmul.f32 %v280, %v280
    %v297 = vmul.f32 %v281, %v281
    %v298 = vmul.f32 %v282, %v282
    %v299 = vmul.f32 %v283, %v283
    %v300 = vmul.f32 %v284, %v284
    %v301 = vmul.f32 %v285, %v285
    %v302 = vmul.f32 %v286, %v286
    %v303 = vmul.f32 %v287, %v287
    %304 = vadd.xlane.f32.xlu0 %v288
    %v305 = vpop.xlane.xlu0 %304
    %306 = vadd.xlane.f32.xlu0 %v289
    %v307 = vpop.xlane.xlu0 %306
    %308 = vadd.xlane.f32.xlu0 %v290
    %v309 = vpop.xlane.xlu0 %308
    %310 = vadd.xlane.f32.xlu0 %v291
    %v311 = vpop.xlane.xlu0 %310
    %312 = vadd.xlane.f32.xlu0 %v292
    %v313 = vpop.xlane.xlu0 %312
    %314 = vadd.xlane.f32.xlu0 %v293
    %v315 = vpop.xlane.xlu0 %314
    %316 = vadd.xlane.f32.xlu0 %v294
    %v317 = vpop.xlane.xlu0 %316
    %318 = vadd.xlane.f32.xlu0 %v295
    %v319 = vpop.xlane.xlu0 %318
    %320 = vadd.xlane.f32.xlu0 %v296
    %v321 = vpop.xlane.xlu0 %320
    %322 = vadd.xlane.f32.xlu0 %v297
    %v323 = vpop.xlane.xlu0 %322
    %324 = vadd.xlane.f32.xlu0 %v298
    %v325 = vpop.xlane.xlu0 %324
    %326 = vadd.xlane.f32.xlu0 %v299
    %v327 = vpop.xlane.xlu0 %326
    %328 = vadd.xlane.f32.xlu0 %v300
    %v329 = vpop.xlane.xlu0 %328
    %330 = vadd.xlane.f32.xlu0 %v301
    %v331 = vpop.xlane.xlu0 %330
    %332 = vadd.xlane.f32.xlu0 %v302
    %v333 = vpop.xlane.xlu0 %332
    %334 = vadd.xlane.f32.xlu0 %v303
    %v335 = vpop.xlane.xlu0 %334
    %v336 = vrsqrt.pop %v305
    %v337 = vrsqrt.pop %v307
    %v338 = vrsqrt.pop %v309
    %v339 = vrsqrt.pop %v311
    %v340 = vrsqrt.pop %v313
    %v341 = vrsqrt.pop %v315
    %v342 = vrsqrt.pop %v317
    %v343 = vrsqrt.pop %v319
    %v344 = vrsqrt.pop %v321
    %v345 = vrsqrt.pop %v323
    %v346 = vrsqrt.pop %v325
    %v347 = vrsqrt.pop %v327
    %v348 = vrsqrt.pop %v329
    %v349 = vrsqrt.pop %v331
    %v350 = vrsqrt.pop %v333
    %v351 = vrsqrt.pop %v335
    %v352 = vmul.f32 %v272, %v336
    %v353 = vmul.f32 %v273, %v337
    %v354 = vmul.f32 %v274, %v338
    %v355 = vmul.f32 %v275, %v339
    %v356 = vmul.f32 %v276, %v340
    %v357 = vmul.f32 %v277, %v341
    %v358 = vmul.f32 %v278, %v342
    %v359 = vmul.f32 %v279, %v343
    %v360 = vmul.f32 %v280, %v344
    %v361 = vmul.f32 %v281, %v345
    %v362 = vmul.f32 %v282, %v346
    %v363 = vmul.f32 %v283, %v347
    %v364 = vmul.f32 %v284, %v348
    %v365 = vmul.f32 %v285, %v349
    %v366 = vmul.f32 %v286, %v350
    %v367 = vmul.f32 %v287, %v351
    %v368 = vld [vmem:[%s3] sm:$0x1]
    %v370 = vlaneseq
    %v371 = vshrl.u32 %v370, 7
    %v372 = vsub.s32 0, %v371
    %v373 = vrot.slane %v368, %v372
    %v375 = vmul.f32 %v352, %v373
    %v376 = vmul.f32 %v353, %v373
    %v377 = vmul.f32 %v354, %v373
    %v378 = vmul.f32 %v355, %v373
    %v379 = vmul.f32 %v356, %v373
    %v380 = vmul.f32 %v357, %v373
    %v381 = vmul.f32 %v358, %v373
    %v382 = vmul.f32 %v359, %v373
    %v383 = vmul.f32 %v360, %v373
    %v384 = vmul.f32 %v361, %v373
    %v385 = vmul.f32 %v362, %v373
    %v386 = vmul.f32 %v363, %v373
    %v387 = vmul.f32 %v364, %v373
    %v388 = vmul.f32 %v365, %v373
    %v389 = vmul.f32 %v366, %v373
    %v390 = vmul.f32 %v367, %v373
    %v391 = vld [vmem:[%s4] sm:$0x1]
    %v393 = vlaneseq
    %v394 = vshrl.u32 %v393, 7
    %v395 = vsub.s32 0, %v394
    %v396 = vrot.slane %v391, %v395
    %v398 = vadd.f32 %v375, %v396
    %v399 = vadd.f32 %v376, %v396
    %v400 = vadd.f32 %v377, %v396
    %v401 = vadd.f32 %v378, %v396
    %v402 = vadd.f32 %v379, %v396
    %v403 = vadd.f32 %v380, %v396
    %v404 = vadd.f32 %v381, %v396
    %v405 = vadd.f32 %v382, %v396
    %v406 = vadd.f32 %v383, %v396
    %v407 = vadd.f32 %v384, %v396
    %v408 = vadd.f32 %v385, %v396
    %v409 = vadd.f32 %v386, %v396
    %v410 = vadd.f32 %v387, %v396
    %v411 = vadd.f32 %v388, %v396
    %v412 = vadd.f32 %v389, %v396
    %v413 = vadd.f32 %v390, %v396
    %v414 = vld [vmem:[#allocation7] sm:$0xff]
    %v415 = vld [vmem:[#allocation7 + $0x8] sm:$0xff]
    %v416 = vld [vmem:[#allocation7 + $0x10] sm:$0xff]
    %v417 = vld [vmem:[#allocation7 + $0x18] sm:$0xff]
    %v418 = vld [vmem:[#allocation7 + $0x20] sm:$0xff]
    %v419 = vld [vmem:[#allocation7 + $0x28] sm:$0xff]
    %v420 = vld [vmem:[#allocation7 + $0x30] sm:$0xff]
    %v421 = vld [vmem:[#allocation7 + $0x38] sm:$0xff]
    %v422 = vld [vmem:[#allocation7 + $0x40] sm:$0xff]
    %v423 = vld [vmem:[#allocation7 + $0x48] sm:$0xff]
    %v424 = vld [vmem:[#allocation7 + $0x50] sm:$0xff]
    %v425 = vld [vmem:[#allocation7 + $0x58] sm:$0xff]
    %v426 = vld [vmem:[#allocation7 + $0x60] sm:$0xff]
    %v427 = vld [vmem:[#allocation7 + $0x68] sm:$0xff]
    %v428 = vld [vmem:[#allocation7 + $0x70] sm:$0xff]
    %v429 = vld [vmem:[#allocation7 + $0x78] sm:$0xff]
    %v430 = vld [vmem:[%s6] sm:$0x1]
    %v432 = vlaneseq
    %v433 = vshrl.u32 %v432, 7
    %v434 = vsub.s32 0, %v433
    %v435 = vrot.slane %v430, %v434
    %437 = vmatprep.subr.mxu0 0.0
    %438 = vmatpush1.msra.mxu0 %v429
    %439 = vmatprep.subr.mxu0 0.0
    %440 = vmatpush1.msra.mxu0 %v428
    %441 = vmatprep.subr.mxu0 0.0
    %442 = vmatpush1.msra.mxu0 %v427
    %443 = vmatprep.subr.mxu0 0.0
    %444 = vmatpush1.msra.mxu0 %v426
    %445 = vmatprep.subr.mxu0 0.0
    %446 = vmatpush1.msra.mxu0 %v425
    %447 = vmatprep.subr.mxu0 0.0
    %448 = vmatpush1.msra.mxu0 %v424
    %449 = vmatprep.subr.mxu0 0.0
    %450 = vmatpush1.msra.mxu0 %v423
    %451 = vmatprep.subr.mxu0 0.0
    %452 = vmatpush1.msra.mxu0 %v422
    %453 = vmatprep.subr.mxu0 0.0
    %454 = vmatpush1.msra.mxu0 %v421
    %455 = vmatprep.subr.mxu0 0.0
    %456 = vmatpush1.msra.mxu0 %v420
    %457 = vmatprep.subr.mxu0 0.0
    %458 = vmatpush1.msra.mxu0 %v419
    %459 = vmatprep.subr.mxu0 0.0
    %460 = vmatpush1.msra.mxu0 %v418
    %461 = vmatprep.subr.mxu0 0.0
    %462 = vmatpush1.msra.mxu0 %v417
    %463 = vmatprep.subr.mxu0 0.0
    %464 = vmatpush1.msra.mxu0 %v416
    %465 = vmatprep.subr.mxu0 0.0
    %466 = vmatpush1.msra.mxu0 %v415
    %467 = vmatprep.subr.mxu0 0.0
    %468 = vmatpush1.msra.mxu0 %v414
    %469 = vmatprep.subr.mxu0 0.0
    %470 = vmatpush2.msra.mxu0 0.0
    %471 = vmatprep.subr.mxu0 0.0
    %472 = vmatpush2.msra.mxu0 0.0
    %473 = vmatprep.subr.mxu0 0.0
    %474 = vmatpush2.msra.mxu0 0.0
    %475 = vmatprep.subr.mxu0 0.0
    %476 = vmatpush2.msra.mxu0 0.0
    %477 = vmatprep.subr.mxu0 0.0
    %478 = vmatpush2.msra.mxu0 0.0
    %479 = vmatprep.subr.mxu0 0.0
    %480 = vmatpush2.msra.mxu0 0.0
    %481 = vmatprep.subr.mxu0 0.0
    %482 = vmatpush2.msra.mxu0 0.0
    %483 = vmatprep.subr.mxu0 0.0
    %484 = vmatpush2.msra.mxu0 0.0
    %485 = vmatprep.subr.mxu0 0.0
    %486 = vmatpush2.msra.mxu0 0.0
    %487 = vmatprep.subr.mxu0 0.0
    %488 = vmatpush2.msra.mxu0 0.0
    %489 = vmatprep.subr.mxu0 0.0
    %490 = vmatpush2.msra.mxu0 0.0
    %491 = vmatprep.subr.mxu0 0.0
    %492 = vmatpush2.msra.mxu0 0.0
    %493 = vmatprep.subr.mxu0 0.0
    %494 = vmatpush2.msra.mxu0 0.0
    %495 = vmatprep.subr.mxu0 0.0
    %496 = vmatpush2.msra.mxu0 0.0
    %497 = vmatprep.subr.mxu0 0.0
    %498 = vmatpush2.msra.mxu0 0.0
    %499 = vmatprep.subr.mxu0 0.0
    %500 = vmatpush2.msra.mxu0 0.0
    %501 = vmatprep.mubr.f32.mxu0 0.0
    %502 = vmatmul.mubr.f32.gmra.mxu0 %v398
    %v503 = vpop.f32.mrf.mxu0
    %v504 = vadd.f32 %v435, %v503
    %v505 = vpop.f32.mrf.mxu0
    %506 = vmatprep.mubr.f32.mxu0 0.0
    %507 = vmatmul.mubr.f32.gmra.mxu0 %v399
    %v508 = vpop.f32.mrf.mxu0
    %v509 = vadd.f32 %v435, %v508
    %v510 = vpop.f32.mrf.mxu0
    %511 = vmatprep.mubr.f32.mxu0 0.0
    %512 = vmatmul.mubr.f32.gmra.mxu0 %v400
    %v513 = vpop.f32.mrf.mxu0
    %v514 = vadd.f32 %v435, %v513
    %v515 = vpop.f32.mrf.mxu0
    %516 = vmatprep.mubr.f32.mxu0 0.0
    %517 = vmatmul.mubr.f32.gmra.mxu0 %v401
    %v518 = vpop.f32.mrf.mxu0
    %v519 = vadd.f32 %v435, %v518
    %v520 = vpop.f32.mrf.mxu0
    %521 = vmatprep.mubr.f32.mxu0 0.0
    %522 = vmatmul.mubr.f32.gmra.mxu0 %v402
    %v523 = vpop.f32.mrf.mxu0
    %v524 = vadd.f32 %v435, %v523
    %v525 = vpop.f32.mrf.mxu0
    %526 = vmatprep.mubr.f32.mxu0 0.0
    %527 = vmatmul.mubr.f32.gmra.mxu0 %v403
    %v528 = vpop.f32.mrf.mxu0
    %v529 = vadd.f32 %v435, %v528
    %v530 = vpop.f32.mrf.mxu0
    %531 = vmatprep.mubr.f32.mxu0 0.0
    %532 = vmatmul.mubr.f32.gmra.mxu0 %v404
    %v533 = vpop.f32.mrf.mxu0
    %v534 = vadd.f32 %v435, %v533
    %v535 = vpop.f32.mrf.mxu0
    %536 = vmatprep.mubr.f32.mxu0 0.0
    %537 = vmatmul.mubr.f32.gmra.mxu0 %v405
    %v538 = vpop.f32.mrf.mxu0
    %v539 = vadd.f32 %v435, %v538
    %v540 = vpop.f32.mrf.mxu0
    %541 = vmatprep.mubr.f32.mxu0 0.0
    %542 = vmatmul.mubr.f32.gmra.mxu0 %v406
    %v543 = vpop.f32.mrf.mxu0
    %v544 = vadd.f32 %v435, %v543
    %v545 = vpop.f32.mrf.mxu0
    %546 = vmatprep.mubr.f32.mxu0 0.0
    %547 = vmatmul.mubr.f32.gmra.mxu0 %v407
    %v548 = vpop.f32.mrf.mxu0
    %v549 = vadd.f32 %v435, %v548
    %v550 = vpop.f32.mrf.mxu0
    %551 = vmatprep.mubr.f32.mxu0 0.0
    %552 = vmatmul.mubr.f32.gmra.mxu0 %v408
    %v553 = vpop.f32.mrf.mxu0
    %v554 = vadd.f32 %v435, %v553
    %v555 = vpop.f32.mrf.mxu0
    %556 = vmatprep.mubr.f32.mxu0 0.0
    %557 = vmatmul.mubr.f32.gmra.mxu0 %v409
    %v558 = vpop.f32.mrf.mxu0
    %v559 = vadd.f32 %v435, %v558
    %v560 = vpop.f32.mrf.mxu0
    %561 = vmatprep.mubr.f32.mxu0 0.0
    %562 = vmatmul.mubr.f32.gmra.mxu0 %v410
    %v563 = vpop.f32.mrf.mxu0
    %v564 = vadd.f32 %v435, %v563
    %v565 = vpop.f32.mrf.mxu0
    %566 = vmatprep.mubr.f32.mxu0 0.0
    %567 = vmatmul.mubr.f32.gmra.mxu0 %v411
    %v568 = vpop.f32.mrf.mxu0
    %v569 = vadd.f32 %v435, %v568
    %v570 = vpop.f32.mrf.mxu0
    %571 = vmatprep.mubr.f32.mxu0 0.0
    %572 = vmatmul.mubr.f32.gmra.mxu0 %v412
    %v573 = vpop.f32.mrf.mxu0
    %v574 = vadd.f32 %v435, %v573
    %v575 = vpop.f32.mrf.mxu0
    %576 = vmatprep.mubr.f32.mxu0 0.0
    %577 = vmatmul.mubr.f32.gmra.mxu0 %v413
    %v578 = vpop.f32.mrf.mxu0
    %v579 = vadd.f32 %v435, %v578
    %v580 = vpop.f32.mrf.mxu0
    %581 = vdwg.mxu0
    %v582 = vld [vmem:[#allocation8] sm:$0xff]
    %v583 = vld [vmem:[#allocation8 + $0x8] sm:$0xff]
    %v584 = vld [vmem:[#allocation8 + $0x10] sm:$0xff]
    %v585 = vld [vmem:[#allocation8 + $0x18] sm:$0xff]
    %v586 = vld [vmem:[#allocation8 + $0x20] sm:$0xff]
    %v587 = vld [vmem:[#allocation8 + $0x28] sm:$0xff]
    %v588 = vld [vmem:[#allocation8 + $0x30] sm:$0xff]
    %v589 = vld [vmem:[#allocation8 + $0x38] sm:$0xff]
    %v590 = vld [vmem:[#allocation8 + $0x40] sm:$0xff]
    %v591 = vld [vmem:[#allocation8 + $0x48] sm:$0xff]
    %v592 = vld [vmem:[#allocation8 + $0x50] sm:$0xff]
    %v593 = vld [vmem:[#allocation8 + $0x58] sm:$0xff]
    %v594 = vld [vmem:[#allocation8 + $0x60] sm:$0xff]
    %v595 = vld [vmem:[#allocation8 + $0x68] sm:$0xff]
    %v596 = vld [vmem:[#allocation8 + $0x70] sm:$0xff]
    %v597 = vld [vmem:[#allocation8 + $0x78] sm:$0xff]
    %v598 = vld [vmem:[%s8] sm:$0x1]
    %v600 = vlaneseq
    %v601 = vshrl.u32 %v600, 7
    %v602 = vsub.s32 0, %v601
    %v603 = vrot.slane %v598, %v602
    %605 = vmatprep.subr.mxu0 0.0
    %606 = vmatpush1.msra.mxu0 %v597
    %607 = vmatprep.subr.mxu0 0.0
    %608 = vmatpush1.msra.mxu0 %v596
    %609 = vmatprep.subr.mxu0 0.0
    %610 = vmatpush1.msra.mxu0 %v595
    %611 = vmatprep.subr.mxu0 0.0
    %612 = vmatpush1.msra.mxu0 %v594
    %613 = vmatprep.subr.mxu0 0.0
    %614 = vmatpush1.msra.mxu0 %v593
    %615 = vmatprep.subr.mxu0 0.0
    %616 = vmatpush1.msra.mxu0 %v592
    %617 = vmatprep.subr.mxu0 0.0
    %618 = vmatpush1.msra.mxu0 %v591
    %619 = vmatprep.subr.mxu0 0.0
    %620 = vmatpush1.msra.mxu0 %v590
    %621 = vmatprep.subr.mxu0 0.0
    %622 = vmatpush1.msra.mxu0 %v589
    %623 = vmatprep.subr.mxu0 0.0
    %624 = vmatpush1.msra.mxu0 %v588
    %625 = vmatprep.subr.mxu0 0.0
    %626 = vmatpush1.msra.mxu0 %v587
    %627 = vmatprep.subr.mxu0 0.0
    %628 = vmatpush1.msra.mxu0 %v586
    %629 = vmatprep.subr.mxu0 0.0
    %630 = vmatpush1.msra.mxu0 %v585
    %631 = vmatprep.subr.mxu0 0.0
    %632 = vmatpush1.msra.mxu0 %v584
    %633 = vmatprep.subr.mxu0 0.0
    %634 = vmatpush1.msra.mxu0 %v583
    %635 = vmatprep.subr.mxu0 0.0
    %636 = vmatpush1.msra.mxu0 %v582
    %637 = vmatprep.subr.mxu0 0.0
    %638 = vmatpush2.msra.mxu0 0.0
    %639 = vmatprep.subr.mxu0 0.0
    %640 = vmatpush2.msra.mxu0 0.0
    %641 = vmatprep.subr.mxu0 0.0
    %642 = vmatpush2.msra.mxu0 0.0
    %643 = vmatprep.subr.mxu0 0.0
    %644 = vmatpush2.msra.mxu0 0.0
    %645 = vmatprep.subr.mxu0 0.0
    %646 = vmatpush2.msra.mxu0 0.0
    %647 = vmatprep.subr.mxu0 0.0
    %648 = vmatpush2.msra.mxu0 0.0
    %649 = vmatprep.subr.mxu0 0.0
    %650 = vmatpush2.msra.mxu0 0.0
    %651 = vmatprep.subr.mxu0 0.0
    %652 = vmatpush2.msra.mxu0 0.0
    %653 = vmatprep.subr.mxu0 0.0
    %654 = vmatpush2.msra.mxu0 0.0
    %655 = vmatprep.subr.mxu0 0.0
    %656 = vmatpush2.msra.mxu0 0.0
    %657 = vmatprep.subr.mxu0 0.0
    %658 = vmatpush2.msra.mxu0 0.0
    %659 = vmatprep.subr.mxu0 0.0
    %660 = vmatpush2.msra.mxu0 0.0
    %661 = vmatprep.subr.mxu0 0.0
    %662 = vmatpush2.msra.mxu0 0.0
    %663 = vmatprep.subr.mxu0 0.0
    %664 = vmatpush2.msra.mxu0 0.0
    %665 = vmatprep.subr.mxu0 0.0
    %666 = vmatpush2.msra.mxu0 0.0
    %667 = vmatprep.subr.mxu0 0.0
    %668 = vmatpush2.msra.mxu0 0.0
    %669 = vmatprep.mubr.f32.mxu0 0.0
    %670 = vmatmul.mubr.f32.gmra.mxu0 %v504
    %v671 = vpop.f32.mrf.mxu0
    %v672 = vadd.f32 %v603, %v671
    %v673 = vpop.f32.mrf.mxu0
    %674 = vmatprep.mubr.f32.mxu0 0.0
    %675 = vmatmul.mubr.f32.gmra.mxu0 %v509
    %v676 = vpop.f32.mrf.mxu0
    %v677 = vadd.f32 %v603, %v676
    %v678 = vpop.f32.mrf.mxu0
    %679 = vmatprep.mubr.f32.mxu0 0.0
    %680 = vmatmul.mubr.f32.gmra.mxu0 %v514
    %v681 = vpop.f32.mrf.mxu0
    %v682 = vadd.f32 %v603, %v681
    %v683 = vpop.f32.mrf.mxu0
    %684 = vmatprep.mubr.f32.mxu0 0.0
    %685 = vmatmul.mubr.f32.gmra.mxu0 %v519
    %v686 = vpop.f32.mrf.mxu0
    %v687 = vadd.f32 %v603, %v686
    %v688 = vpop.f32.mrf.mxu0
    %689 = vmatprep.mubr.f32.mxu0 0.0
    %690 = vmatmul.mubr.f32.gmra.mxu0 %v524
    %v691 = vpop.f32.mrf.mxu0
    %v692 = vadd.f32 %v603, %v691
    %v693 = vpop.f32.mrf.mxu0
    %694 = vmatprep.mubr.f32.mxu0 0.0
    %695 = vmatmul.mubr.f32.gmra.mxu0 %v529
    %v696 = vpop.f32.mrf.mxu0
    %v697 = vadd.f32 %v603, %v696
    %v698 = vpop.f32.mrf.mxu0
    %699 = vmatprep.mubr.f32.mxu0 0.0
    %700 = vmatmul.mubr.f32.gmra.mxu0 %v534
    %v701 = vpop.f32.mrf.mxu0
    %v702 = vadd.f32 %v603, %v701
    %v703 = vpop.f32.mrf.mxu0
    %704 = vmatprep.mubr.f32.mxu0 0.0
    %705 = vmatmul.mubr.f32.gmra.mxu0 %v539
    %v706 = vpop.f32.mrf.mxu0
    %v707 = vadd.f32 %v603, %v706
    %v708 = vpop.f32.mrf.mxu0
    %709 = vmatprep.mubr.f32.mxu0 0.0
    %710 = vmatmul.mubr.f32.gmra.mxu0 %v544
    %v711 = vpop.f32.mrf.mxu0
    %v712 = vadd.f32 %v603, %v711
    %v713 = vpop.f32.mrf.mxu0
    %714 = vmatprep.mubr.f32.mxu0 0.0
    %715 = vmatmul.mubr.f32.gmra.mxu0 %v549
    %v716 = vpop.f32.mrf.mxu0
    %v717 = vadd.f32 %v603, %v716
    %v718 = vpop.f32.mrf.mxu0
    %719 = vmatprep.mubr.f32.mxu0 0.0
    %720 = vmatmul.mubr.f32.gmra.mxu0 %v554
    %v721 = vpop.f32.mrf.mxu0
    %v722 = vadd.f32 %v603, %v721
    %v723 = vpop.f32.mrf.mxu0
    %724 = vmatprep.mubr.f32.mxu0 0.0
    %725 = vmatmul.mubr.f32.gmra.mxu0 %v559
    %v726 = vpop.f32.mrf.mxu0
    %v727 = vadd.f32 %v603, %v726
    %v728 = vpop.f32.mrf.mxu0
    %729 = vmatprep.mubr.f32.mxu0 0.0
    %730 = vmatmul.mubr.f32.gmra.mxu0 %v564
    %v731 = vpop.f32.mrf.mxu0
    %v732 = vadd.f32 %v603, %v731
    %v733 = vpop.f32.mrf.mxu0
    %734 = vmatprep.mubr.f32.mxu0 0.0
    %735 = vmatmul.mubr.f32.gmra.mxu0 %v569
    %v736 = vpop.f32.mrf.mxu0
    %v737 = vadd.f32 %v603, %v736
    %v738 = vpop.f32.mrf.mxu0
    %739 = vmatprep.mubr.f32.mxu0 0.0
    %740 = vmatmul.mubr.f32.gmra.mxu0 %v574
    %v741 = vpop.f32.mrf.mxu0
    %v742 = vadd.f32 %v603, %v741
    %v743 = vpop.f32.mrf.mxu0
    %744 = vmatprep.mubr.f32.mxu0 0.0
    %745 = vmatmul.mubr.f32.gmra.mxu0 %v579
    %v746 = vpop.f32.mrf.mxu0
    %v747 = vadd.f32 %v603, %v746
    %v748 = vpop.f32.mrf.mxu0
    %749 = vdwg.mxu0
    %750 = vst [vmem:[#allocation10] sm:$0xff] %v672
    %751 = vst [vmem:[#allocation10 + $0x8] sm:$0xff] %v677
    %752 = vst [vmem:[#allocation10 + $0x10] sm:$0xff] %v682
    %753 = vst [vmem:[#allocation10 + $0x18] sm:$0xff] %v687
    %754 = vst [vmem:[#allocation10 + $0x20] sm:$0xff] %v692
    %755 = vst [vmem:[#allocation10 + $0x28] sm:$0xff] %v697
    %756 = vst [vmem:[#allocation10 + $0x30] sm:$0xff] %v702
    %757 = vst [vmem:[#allocation10 + $0x38] sm:$0xff] %v707
    %758 = vst [vmem:[#allocation10 + $0x40] sm:$0xff] %v712
    %759 = vst [vmem:[#allocation10 + $0x48] sm:$0xff] %v717
    %760 = vst [vmem:[#allocation10 + $0x50] sm:$0xff] %v722
    %761 = vst [vmem:[#allocation10 + $0x58] sm:$0xff] %v727
    %762 = vst [vmem:[#allocation10 + $0x60] sm:$0xff] %v732
    %763 = vst [vmem:[#allocation10 + $0x68] sm:$0xff] %v737
    %764 = vst [vmem:[#allocation10 + $0x70] sm:$0xff] %v742
    %765 = vst [vmem:[#allocation10 + $0x78] sm:$0xff] %v747
    // Predicated region
    $region54: #{tpu_custom_call.1} parent=1 // pred_check
      _
    $region55: #{tpu_custom_call.1} parent=1 // pred_check_branch
      %767 = sbr.rel (0) target = $region57
    $region56: #{tpu_custom_call.1} parent=1 // pred_region
      %s769 = ssub.s32 2048, 2048
      %770 = vsyncadd [#allocation4], %s769
      %s771 = sshll.u32 [#allocation10], 4
      %s772 = int_to_ptr.vmem [resolvable:$true] %s771
      %777 = dma.vmem_to_hbm [thread:$0]  %s772, 2048, %s9, [#allocation4], 128, 128, 8
    $region57: #{tpu_custom_call.1} parent=1 // pred_fallthru
      _
    // Predicated region
    $region58: #{tpu_custom_call.1} parent=1 // pred_check
      _
    $region59: #{tpu_custom_call.1} parent=1 // pred_check_branch
      %779 = sbr.rel (0) target = $region61
    $region60: #{tpu_custom_call.1} parent=1 // pred_region
      %780 = dma.done [#allocation4], 2048
    $region61: #{tpu_custom_call.1} parent=1 // pred_fallthru
      _
    %781 = vsyncpa [#allocation3], 1
    %782 = vsyncpa [#allocation6], 1
    %783 = vsyncpa [#allocation9], 1
    %784 = vsyncpa [#allocation4], 1

</llo_original>
